<compile_context>
chip_gen: v7x
topology: tpu7x:2x2x1
jax: 0.10.0
libtpu: 0.0.40
codegen_flags: <defaults>
</compile_context>

<pallas_src>
import functools

import jax
import jax.numpy as jnp
from jax.experimental import pallas as pl
from jax.experimental.pallas import tpu as pltpu


def _residual_conv_block_kernel(x_ref, w_ref, out_ref, slab_ref, *, height, width):
    """x_ref/out_ref: (B*C, H*W) f32 -- rows = (batch, channel), lanes = (y, x).

    w_ref:    (2*B*C, K) f32  packed folded weights: rows [0, B*C) = conv1,
              rows [B*C, 2*B*C) = conv2 pre-scaled by 0.1.  Columns: 9 tap
              blocks of width B*C (batch-block-diagonal kron fold), then one
              bias column, then zero padding up to K (multiple of 8).
    slab_ref: (K, H*W) f32 VMEM scratch -- im2col slab, reused for both convs.
    """
    H, W = height, width
    HW = H * W
    BC = x_ref.shape[0]
    K = slab_ref.shape[0]
    K_taps = 9 * BC

    x = x_ref[...]
    w1 = w_ref[pl.ds(0, BC), :]
    w2 = w_ref[pl.ds(BC, BC), :]          # already scaled by 0.1 at fold time

    # --- border masks: built ONCE, reused by both im2col fills -------------
    n = jax.lax.broadcasted_iota(jnp.int32, (BC, HW), 1)   # n = y*W + x
    col = n % W                                            # x coordinate

    taps = [(dy - 1, dx - 1) for dy in range(3) for dx in range(3)]
    masks = []
    for oy, ox in taps:
        valid = None
        if oy < 0:
            valid = n >= W                        # y - 1 >= 0
        elif oy > 0:
            valid = n < HW - W                    # y + 1 <= H - 1
        if ox < 0:
            m = col >= 1                          # x - 1 >= 0
            valid = m if valid is None else jnp.logical_and(valid, m)
        elif ox > 0:
            m = col <= W - 2                      # x + 1 <= W - 1
            valid = m if valid is None else jnp.logical_and(valid, m)
        masks.append(valid)

    # Constant-ones bias rows (columns >= K_taps of w carry the folded bias);
    # written once, they persist across both conv fills below.
    slab_ref[pl.ds(K_taps, K - K_taps), :] = jnp.ones((K - K_taps, HW), jnp.float32)

    def fill_taps(img):
        """Write the 9 shifted+masked copies of `img` into slab rows [0, 9*BC)."""
        for t, ((oy, ox), valid) in enumerate(zip(taps, masks)):
            off = oy * W + ox
            if off == 0:
                shifted = img
            else:
                # shifted[:, m] = img[:, m + off]   (lane roll, XLU slot).
                shifted = pltpu.roll(img, (-off) % HW, axis=1)
            if valid is not None:
                # Mask taps falling into the zero padding (also kills the
                # circular wrap-around / cross-row contamination of the roll).
                shifted = jnp.where(valid, shifted, 0.0)
            slab_ref[pl.ds(t * BC, BC), :] = shifted

    # conv1 (+ folded bias) + ReLU: one (BC, K) x (K, HW) MXU matmul.
    fill_taps(x)
    h = jnp.maximum(
        jnp.dot(w1, slab_ref[...], preferred_element_type=jnp.float32), 0.0)

    # conv2 (+ folded bias, pre-scaled by 0.1), epilogue = single residual add.
    # (Tolerance note: default MXU f32 precision; matches the f32 reference to
    #  well under 1e-4 at these magnitudes.)
    fill_taps(h)
    out_ref[...] = jnp.dot(w2, slab_ref[...],
                           preferred_element_type=jnp.float32) + x


def fold_residual_conv_params(w1, b1, w2, b2, batch):
    """One-time parameter preprocessing (NOT on the per-call forward path).

    (C, C, 3, 3) PyTorch OIHW weights + (C,) biases -> single packed
    (2*B*C, K) slab.  Column block t = dy*3+dx is kron(I_B, w[:, :, dy, dx])
    (batch-block-diagonal so one matmul handles all images without mixing
    batches); column 9*B*C carries the bias (ones row in the im2col slab);
    remaining columns are zero padding so K is a multiple of 8.  The conv2 half
    is pre-scaled by the 0.1 residual scale.

    NOTE: assumes activation rows are batch-major / channel-minor, i.e. the
    wrapper builds x2d via x.reshape(B*C, H*W) from NCHW.
    """
    C = w1.shape[0]
    BC = batch * C
    K_taps = 9 * BC
    K = ((K_taps + 1 + 7) // 8) * 8
    eye_b = jnp.eye(batch, dtype=jnp.float32)

    def fold(w, b, scale):
        blocks = [jnp.kron(eye_b, w[:, :, dy, dx].astype(jnp.float32))
                  for dy in range(3) for dx in range(3)]
        wt = jnp.concatenate(blocks, axis=1)                       # (BC, 9*BC)
        bias_col = jnp.tile(b.astype(jnp.float32), batch).reshape(BC, 1)
        pad = jnp.zeros((BC, K - K_taps - 1), jnp.float32)
        return scale * jnp.concatenate([wt, bias_col, pad], axis=1)  # (BC, K)

    w_packed = jnp.concatenate([fold(w1, b1, 1.0), fold(w2, b2, 0.1)], axis=0)
    assert w_packed.shape == (2 * BC, K)
    return w_packed


@jax.jit
def residual_conv_block(x_nchw, w_packed):
    """x_nchw: (B, C, H, W); w_packed: (2*B*C, K) from fold_residual_conv_params."""
    B, C, H, W = x_nchw.shape
    BC, HW = B * C, H * W
    K = w_packed.shape[1]

    # Free row-major reshape (no transpose / pad launches on the data path).
    x2d = x_nchw.reshape(BC, HW).astype(jnp.float32)

    vmem = pl.BlockSpec(memory_space=pltpu.MemorySpace.VMEM)
    out2d = pl.pallas_call(
        functools.partial(_residual_conv_block_kernel, height=H, width=W),
        out_shape=jax.ShapeDtypeStruct((BC, HW), jnp.float32),
        in_specs=[vmem, vmem],
        out_specs=vmem,
        scratch_shapes=[pltpu.VMEM((K, HW), jnp.float32)],
    )(x2d, w_packed)

    return out2d.reshape(B, C, H, W)


def _reference(x_nchw, w1, b1, w2, b2):
    """Pure-JAX reference mirroring the PyTorch forward (NCHW convs)."""
    dn = jax.lax.conv_dimension_numbers(x_nchw.shape, w1.shape,
                                        ("NCHW", "OIHW", "NCHW"))
    c1 = jax.lax.conv_general_dilated(x_nchw, w1, (1, 1), ((1, 1), (1, 1)),
                                      dimension_numbers=dn)
    c1 = jnp.maximum(c1 + b1[None, :, None, None], 0.0)
    c2 = jax.lax.conv_general_dilated(c1, w2, (1, 1), ((1, 1), (1, 1)),
                                      dimension_numbers=dn)
    c2 = c2 + b2[None, :, None, None]
    return c2 * 0.1 + x_nchw


if __name__ == "__main__":
    B, C, H, W = 2, 4, 16, 16
    key = jax.random.PRNGKey(0)
    kx, k1, kb1, k2, kb2 = jax.random.split(key, 5)

    x = jax.random.normal(kx, (B, C, H, W), dtype=jnp.float32)

    # Deterministic parameter init (PyTorch-style uniform(+-1/sqrt(fan_in))).
    fan_in = C * 3 * 3
    bound = 1.0 / (fan_in ** 0.5)
    w1 = jax.random.uniform(k1, (C, C, 3, 3), jnp.float32, -bound, bound)
    b1 = jax.random.uniform(kb1, (C,), jnp.float32, -bound, bound)
    w2 = jax.random.uniform(k2, (C, C, 3, 3), jnp.float32, -bound, bound)
    b2 = jax.random.uniform(kb2, (C,), jnp.float32, -bound, bound)

    # One-time weight fold (parameter-load time), off the per-call jit path.
    w_packed = jax.block_until_ready(fold_residual_conv_params(w1, b1, w2, b2, B))

    out = jax.block_until_ready(residual_conv_block(x, w_packed))
    ref = jax.block_until_ready(_reference(x, w1, b1, w2, b2))

    assert out.shape == (B, C, H, W)
    assert jnp.allclose(out, ref, atol=1e-4, rtol=1e-4), "mismatch vs reference"

    print("KERNEL_OK")
</pallas_src>

<mosaic_0001>
module attributes {stable_mosaic.version = 11 : i64} {
  func.func @_residual_conv_block_kernel(%arg0: memref<8x256xf32, #tpu.memory_space<vmem>>, %arg1: memref<16x80xf32, #tpu.memory_space<vmem>>, %arg2: memref<8x256xf32, #tpu.memory_space<vmem>>, %arg3: memref<80x256xf32, #tpu.memory_space<vmem>>) attributes {dimension_semantics = [], scalar_prefetch = 0 : i64, scratch_operands = 1 : i64, tpu.core_type = #tpu.core_type<tc>} {
    %c0 = arith.constant 0 : index
    %c0_0 = arith.constant 0 : index
    %0 = vector.load %arg0[%c0, %c0_0] : memref<8x256xf32, #tpu.memory_space<vmem>>, vector<8x256xf32>
    %c0_1 = arith.constant 0 : index
    %c0_2 = arith.constant 0 : index
    %1 = vector.load %arg1[%c0_1, %c0_2] : memref<16x80xf32, #tpu.memory_space<vmem>>, vector<8x80xf32>
    %c8 = arith.constant 8 : index
    %c0_3 = arith.constant 0 : index
    %2 = vector.load %arg1[%c8, %c0_3] : memref<16x80xf32, #tpu.memory_space<vmem>>, vector<8x80xf32>
    %3 = tpu.iota {dimensions = array<i32: 1>} : vector<8x256xi32>
    %c16_i32 = arith.constant 16 : i32
    %c0_i32 = arith.constant 0 : i32
    %4 = arith.cmpi eq, %c16_i32, %c0_i32 : i32
    %c1_i32 = arith.constant 1 : i32
    %5 = arith.select %4, %c1_i32, %c16_i32 : i32
    %6 = vector.broadcast %5 : i32 to vector<8x256xi32>
    %7 = arith.remsi %3, %6 : vector<8x256xi32>
    %c0_i32_4 = arith.constant 0 : i32
    %8 = vector.broadcast %c0_i32_4 : i32 to vector<8x256xi32>
    %9 = arith.cmpi ne, %7, %8 : vector<8x256xi32>
    %c0_i32_5 = arith.constant 0 : i32
    %10 = vector.broadcast %c0_i32_5 : i32 to vector<8x256xi32>
    %11 = arith.cmpi slt, %7, %10 : vector<8x256xi32>
    %c0_i32_6 = arith.constant 0 : i32
    %12 = arith.cmpi slt, %5, %c0_i32_6 : i32
    %13 = vector.broadcast %12 : i1 to vector<8x256xi1>
    %14 = vector.broadcast %13 : vector<8x256xi1> to vector<8x256xi1>
    %15 = arith.xori %11, %14 : vector<8x256xi1>
    %16 = arith.andi %15, %9 : vector<8x256xi1>
    %17 = vector.broadcast %5 : i32 to vector<8x256xi32>
    %18 = arith.addi %7, %17 : vector<8x256xi32>
    %19 = arith.select %16, %18, %7 : vector<8x256xi1>, vector<8x256xi32>
    %c16_i32_7 = arith.constant 16 : i32
    %20 = vector.broadcast %c16_i32_7 : i32 to vector<8x256xi32>
    %21 = arith.cmpi sge, %3, %20 : vector<8x256xi32>
    %c1_i32_8 = arith.constant 1 : i32
    %22 = vector.broadcast %c1_i32_8 : i32 to vector<8x256xi32>
    %23 = arith.cmpi sge, %19, %22 : vector<8x256xi32>
    %24 = arith.andi %21, %23 : vector<8x256xi1>
    %c16_i32_9 = arith.constant 16 : i32
    %25 = vector.broadcast %c16_i32_9 : i32 to vector<8x256xi32>
    %26 = arith.cmpi sge, %3, %25 : vector<8x256xi32>
    %c16_i32_10 = arith.constant 16 : i32
    %27 = vector.broadcast %c16_i32_10 : i32 to vector<8x256xi32>
    %28 = arith.cmpi sge, %3, %27 : vector<8x256xi32>
    %c14_i32 = arith.constant 14 : i32
    %29 = vector.broadcast %c14_i32 : i32 to vector<8x256xi32>
    %30 = arith.cmpi sle, %19, %29 : vector<8x256xi32>
    %31 = arith.andi %28, %30 : vector<8x256xi1>
    %c1_i32_11 = arith.constant 1 : i32
    %32 = vector.broadcast %c1_i32_11 : i32 to vector<8x256xi32>
    %33 = arith.cmpi sge, %19, %32 : vector<8x256xi32>
    %c14_i32_12 = arith.constant 14 : i32
    %34 = vector.broadcast %c14_i32_12 : i32 to vector<8x256xi32>
    %35 = arith.cmpi sle, %19, %34 : vector<8x256xi32>
    %c240_i32 = arith.constant 240 : i32
    %36 = vector.broadcast %c240_i32 : i32 to vector<8x256xi32>
    %37 = arith.cmpi slt, %3, %36 : vector<8x256xi32>
    %c1_i32_13 = arith.constant 1 : i32
    %38 = vector.broadcast %c1_i32_13 : i32 to vector<8x256xi32>
    %39 = arith.cmpi sge, %19, %38 : vector<8x256xi32>
    %40 = arith.andi %37, %39 : vector<8x256xi1>
    %c240_i32_14 = arith.constant 240 : i32
    %41 = vector.broadcast %c240_i32_14 : i32 to vector<8x256xi32>
    %42 = arith.cmpi slt, %3, %41 : vector<8x256xi32>
    %c240_i32_15 = arith.constant 240 : i32
    %43 = vector.broadcast %c240_i32_15 : i32 to vector<8x256xi32>
    %44 = arith.cmpi slt, %3, %43 : vector<8x256xi32>
    %c14_i32_16 = arith.constant 14 : i32
    %45 = vector.broadcast %c14_i32_16 : i32 to vector<8x256xi32>
    %46 = arith.cmpi sle, %19, %45 : vector<8x256xi32>
    %47 = arith.andi %44, %46 : vector<8x256xi1>
    %cst = arith.constant 1.000000e+00 : f32
    %48 = vector.broadcast %cst : f32 to vector<8x256xf32>
    %c72 = arith.constant 72 : index
    %c0_17 = arith.constant 0 : index
    %49 = vector.load %arg3[%c72, %c0_17] : memref<80x256xf32, #tpu.memory_space<vmem>>, vector<8x256xf32>
    tpu.vector_store %arg3[%c72, %c0_17], %48 {strides = array<i32>} : memref<80x256xf32, #tpu.memory_space<vmem>>, vector<8x256xf32>,
    %c17_i32 = arith.constant 17 : i32
    %50 = tpu.dynamic_rotate %0 by %c17_i32 dim 1 : vector<8x256xf32>, i32 -> vector<8x256xf32>
    %cst_18 = arith.constant 0.000000e+00 : f32
    %51 = vector.broadcast %cst_18 : f32 to vector<8x256xf32>
    %52 = arith.select %24, %50, %51 : vector<8x256xi1>, vector<8x256xf32>
    %c0_19 = arith.constant 0 : index
    %c0_20 = arith.constant 0 : index
    %53 = vector.load %arg3[%c0_19, %c0_20] : memref<80x256xf32, #tpu.memory_space<vmem>>, vector<8x256xf32>
    tpu.vector_store %arg3[%c0_19, %c0_20], %52 {strides = array<i32>} : memref<80x256xf32, #tpu.memory_space<vmem>>, vector<8x256xf32>,
    %c16_i32_21 = arith.constant 16 : i32
    %54 = tpu.dynamic_rotate %0 by %c16_i32_21 dim 1 : vector<8x256xf32>, i32 -> vector<8x256xf32>
    %cst_22 = arith.constant 0.000000e+00 : f32
    %55 = vector.broadcast %cst_22 : f32 to vector<8x256xf32>
    %56 = arith.select %26, %54, %55 : vector<8x256xi1>, vector<8x256xf32>
    %c8_23 = arith.constant 8 : index
    %c0_24 = arith.constant 0 : index
    %57 = vector.load %arg3[%c8_23, %c0_24] : memref<80x256xf32, #tpu.memory_space<vmem>>, vector<8x256xf32>
    tpu.vector_store %arg3[%c8_23, %c0_24], %56 {strides = array<i32>} : memref<80x256xf32, #tpu.memory_space<vmem>>, vector<8x256xf32>,
    %c15_i32 = arith.constant 15 : i32
    %58 = tpu.dynamic_rotate %0 by %c15_i32 dim 1 : vector<8x256xf32>, i32 -> vector<8x256xf32>
    %cst_25 = arith.constant 0.000000e+00 : f32
    %59 = vector.broadcast %cst_25 : f32 to vector<8x256xf32>
    %60 = arith.select %31, %58, %59 : vector<8x256xi1>, vector<8x256xf32>
    %c16 = arith.constant 16 : index
    %c0_26 = arith.constant 0 : index
    %61 = vector.load %arg3[%c16, %c0_26] : memref<80x256xf32, #tpu.memory_space<vmem>>, vector<8x256xf32>
    tpu.vector_store %arg3[%c16, %c0_26], %60 {strides = array<i32>} : memref<80x256xf32, #tpu.memory_space<vmem>>, vector<8x256xf32>,
    %c1_i32_27 = arith.constant 1 : i32
    %62 = tpu.dynamic_rotate %0 by %c1_i32_27 dim 1 : vector<8x256xf32>, i32 -> vector<8x256xf32>
    %cst_28 = arith.constant 0.000000e+00 : f32
    %63 = vector.broadcast %cst_28 : f32 to vector<8x256xf32>
    %64 = arith.select %33, %62, %63 : vector<8x256xi1>, vector<8x256xf32>
    %c24 = arith.constant 24 : index
    %c0_29 = arith.constant 0 : index
    %65 = vector.load %arg3[%c24, %c0_29] : memref<80x256xf32, #tpu.memory_space<vmem>>, vector<8x256xf32>
    tpu.vector_store %arg3[%c24, %c0_29], %64 {strides = array<i32>} : memref<80x256xf32, #tpu.memory_space<vmem>>, vector<8x256xf32>,
    %c32 = arith.constant 32 : index
    %c0_30 = arith.constant 0 : index
    %66 = vector.load %arg3[%c32, %c0_30] : memref<80x256xf32, #tpu.memory_space<vmem>>, vector<8x256xf32>
    tpu.vector_store %arg3[%c32, %c0_30], %0 {strides = array<i32>} : memref<80x256xf32, #tpu.memory_space<vmem>>, vector<8x256xf32>,
    %c255_i32 = arith.constant 255 : i32
    %67 = tpu.dynamic_rotate %0 by %c255_i32 dim 1 : vector<8x256xf32>, i32 -> vector<8x256xf32>
    %cst_31 = arith.constant 0.000000e+00 : f32
    %68 = vector.broadcast %cst_31 : f32 to vector<8x256xf32>
    %69 = arith.select %35, %67, %68 : vector<8x256xi1>, vector<8x256xf32>
    %c40 = arith.constant 40 : index
    %c0_32 = arith.constant 0 : index
    %70 = vector.load %arg3[%c40, %c0_32] : memref<80x256xf32, #tpu.memory_space<vmem>>, vector<8x256xf32>
    tpu.vector_store %arg3[%c40, %c0_32], %69 {strides = array<i32>} : memref<80x256xf32, #tpu.memory_space<vmem>>, vector<8x256xf32>,
    %c241_i32 = arith.constant 241 : i32
    %71 = tpu.dynamic_rotate %0 by %c241_i32 dim 1 : vector<8x256xf32>, i32 -> vector<8x256xf32>
    %cst_33 = arith.constant 0.000000e+00 : f32
    %72 = vector.broadcast %cst_33 : f32 to vector<8x256xf32>
    %73 = arith.select %40, %71, %72 : vector<8x256xi1>, vector<8x256xf32>
    %c48 = arith.constant 48 : index
    %c0_34 = arith.constant 0 : index
    %74 = vector.load %arg3[%c48, %c0_34] : memref<80x256xf32, #tpu.memory_space<vmem>>, vector<8x256xf32>
    tpu.vector_store %arg3[%c48, %c0_34], %73 {strides = array<i32>} : memref<80x256xf32, #tpu.memory_space<vmem>>, vector<8x256xf32>,
    %c240_i32_35 = arith.constant 240 : i32
    %75 = tpu.dynamic_rotate %0 by %c240_i32_35 dim 1 : vector<8x256xf32>, i32 -> vector<8x256xf32>
    %cst_36 = arith.constant 0.000000e+00 : f32
    %76 = vector.broadcast %cst_36 : f32 to vector<8x256xf32>
    %77 = arith.select %42, %75, %76 : vector<8x256xi1>, vector<8x256xf32>
    %c56 = arith.constant 56 : index
    %c0_37 = arith.constant 0 : index
    %78 = vector.load %arg3[%c56, %c0_37] : memref<80x256xf32, #tpu.memory_space<vmem>>, vector<8x256xf32>
    tpu.vector_store %arg3[%c56, %c0_37], %77 {strides = array<i32>} : memref<80x256xf32, #tpu.memory_space<vmem>>, vector<8x256xf32>,
    %c239_i32 = arith.constant 239 : i32
    %79 = tpu.dynamic_rotate %0 by %c239_i32 dim 1 : vector<8x256xf32>, i32 -> vector<8x256xf32>
    %cst_38 = arith.constant 0.000000e+00 : f32
    %80 = vector.broadcast %cst_38 : f32 to vector<8x256xf32>
    %81 = arith.select %47, %79, %80 : vector<8x256xi1>, vector<8x256xf32>
    %c64 = arith.constant 64 : index
    %c0_39 = arith.constant 0 : index
    %82 = vector.load %arg3[%c64, %c0_39] : memref<80x256xf32, #tpu.memory_space<vmem>>, vector<8x256xf32>
    tpu.vector_store %arg3[%c64, %c0_39], %81 {strides = array<i32>} : memref<80x256xf32, #tpu.memory_space<vmem>>, vector<8x256xf32>,
    %c0_40 = arith.constant 0 : index
    %c0_41 = arith.constant 0 : index
    %83 = vector.load %arg3[%c0_40, %c0_41] : memref<80x256xf32, #tpu.memory_space<vmem>>, vector<80x256xf32>
    %cst_42 = arith.constant dense<0.000000e+00> : vector<8x256xf32>
    %84 = tpu.matmul %1, %83, %cst_42 {dimension_numbers = #tpu.dot_dimension_numbers<[1], [0], [0], [1], [0, 0, 1, 1], [], []>} : vector<8x80xf32>, vector<80x256xf32>, vector<8x256xf32> -> vector<8x256xf32>
    %cst_43 = arith.constant 0.000000e+00 : f32
    %85 = vector.broadcast %cst_43 : f32 to vector<8x256xf32>
    %86 = arith.maximumf %84, %85 : vector<8x256xf32>
    %c17_i32_44 = arith.constant 17 : i32
    %87 = tpu.dynamic_rotate %86 by %c17_i32_44 dim 1 : vector<8x256xf32>, i32 -> vector<8x256xf32>
    %cst_45 = arith.constant 0.000000e+00 : f32
    %88 = vector.broadcast %cst_45 : f32 to vector<8x256xf32>
    %89 = arith.select %24, %87, %88 : vector<8x256xi1>, vector<8x256xf32>
    %c0_46 = arith.constant 0 : index
    %c0_47 = arith.constant 0 : index
    %90 = vector.load %arg3[%c0_46, %c0_47] : memref<80x256xf32, #tpu.memory_space<vmem>>, vector<8x256xf32>
    tpu.vector_store %arg3[%c0_46, %c0_47], %89 {strides = array<i32>} : memref<80x256xf32, #tpu.memory_space<vmem>>, vector<8x256xf32>,
    %c16_i32_48 = arith.constant 16 : i32
    %91 = tpu.dynamic_rotate %86 by %c16_i32_48 dim 1 : vector<8x256xf32>, i32 -> vector<8x256xf32>
    %cst_49 = arith.constant 0.000000e+00 : f32
    %92 = vector.broadcast %cst_49 : f32 to vector<8x256xf32>
    %93 = arith.select %26, %91, %92 : vector<8x256xi1>, vector<8x256xf32>
    %c8_50 = arith.constant 8 : index
    %c0_51 = arith.constant 0 : index
    %94 = vector.load %arg3[%c8_50, %c0_51] : memref<80x256xf32, #tpu.memory_space<vmem>>, vector<8x256xf32>
    tpu.vector_store %arg3[%c8_50, %c0_51], %93 {strides = array<i32>} : memref<80x256xf32, #tpu.memory_space<vmem>>, vector<8x256xf32>,
    %c15_i32_52 = arith.constant 15 : i32
    %95 = tpu.dynamic_rotate %86 by %c15_i32_52 dim 1 : vector<8x256xf32>, i32 -> vector<8x256xf32>
    %cst_53 = arith.constant 0.000000e+00 : f32
    %96 = vector.broadcast %cst_53 : f32 to vector<8x256xf32>
    %97 = arith.select %31, %95, %96 : vector<8x256xi1>, vector<8x256xf32>
    %c16_54 = arith.constant 16 : index
    %c0_55 = arith.constant 0 : index
    %98 = vector.load %arg3[%c16_54, %c0_55] : memref<80x256xf32, #tpu.memory_space<vmem>>, vector<8x256xf32>
    tpu.vector_store %arg3[%c16_54, %c0_55], %97 {strides = array<i32>} : memref<80x256xf32, #tpu.memory_space<vmem>>, vector<8x256xf32>,
    %c1_i32_56 = arith.constant 1 : i32
    %99 = tpu.dynamic_rotate %86 by %c1_i32_56 dim 1 : vector<8x256xf32>, i32 -> vector<8x256xf32>
    %cst_57 = arith.constant 0.000000e+00 : f32
    %100 = vector.broadcast %cst_57 : f32 to vector<8x256xf32>
    %101 = arith.select %33, %99, %100 : vector<8x256xi1>, vector<8x256xf32>
    %c24_58 = arith.constant 24 : index
    %c0_59 = arith.constant 0 : index
    %102 = vector.load %arg3[%c24_58, %c0_59] : memref<80x256xf32, #tpu.memory_space<vmem>>, vector<8x256xf32>
    tpu.vector_store %arg3[%c24_58, %c0_59], %101 {strides = array<i32>} : memref<80x256xf32, #tpu.memory_space<vmem>>, vector<8x256xf32>,
    %c32_60 = arith.constant 32 : index
    %c0_61 = arith.constant 0 : index
    %103 = vector.load %arg3[%c32_60, %c0_61] : memref<80x256xf32, #tpu.memory_space<vmem>>, vector<8x256xf32>
    tpu.vector_store %arg3[%c32_60, %c0_61], %86 {strides = array<i32>} : memref<80x256xf32, #tpu.memory_space<vmem>>, vector<8x256xf32>,
    %c255_i32_62 = arith.constant 255 : i32
    %104 = tpu.dynamic_rotate %86 by %c255_i32_62 dim 1 : vector<8x256xf32>, i32 -> vector<8x256xf32>
    %cst_63 = arith.constant 0.000000e+00 : f32
    %105 = vector.broadcast %cst_63 : f32 to vector<8x256xf32>
    %106 = arith.select %35, %104, %105 : vector<8x256xi1>, vector<8x256xf32>
    %c40_64 = arith.constant 40 : index
    %c0_65 = arith.constant 0 : index
    %107 = vector.load %arg3[%c40_64, %c0_65] : memref<80x256xf32, #tpu.memory_space<vmem>>, vector<8x256xf32>
    tpu.vector_store %arg3[%c40_64, %c0_65], %106 {strides = array<i32>} : memref<80x256xf32, #tpu.memory_space<vmem>>, vector<8x256xf32>,
    %c241_i32_66 = arith.constant 241 : i32
    %108 = tpu.dynamic_rotate %86 by %c241_i32_66 dim 1 : vector<8x256xf32>, i32 -> vector<8x256xf32>
    %cst_67 = arith.constant 0.000000e+00 : f32
    %109 = vector.broadcast %cst_67 : f32 to vector<8x256xf32>
    %110 = arith.select %40, %108, %109 : vector<8x256xi1>, vector<8x256xf32>
    %c48_68 = arith.constant 48 : index
    %c0_69 = arith.constant 0 : index
    %111 = vector.load %arg3[%c48_68, %c0_69] : memref<80x256xf32, #tpu.memory_space<vmem>>, vector<8x256xf32>
    tpu.vector_store %arg3[%c48_68, %c0_69], %110 {strides = array<i32>} : memref<80x256xf32, #tpu.memory_space<vmem>>, vector<8x256xf32>,
    %c240_i32_70 = arith.constant 240 : i32
    %112 = tpu.dynamic_rotate %86 by %c240_i32_70 dim 1 : vector<8x256xf32>, i32 -> vector<8x256xf32>
    %cst_71 = arith.constant 0.000000e+00 : f32
    %113 = vector.broadcast %cst_71 : f32 to vector<8x256xf32>
    %114 = arith.select %42, %112, %113 : vector<8x256xi1>, vector<8x256xf32>
    %c56_72 = arith.constant 56 : index
    %c0_73 = arith.constant 0 : index
    %115 = vector.load %arg3[%c56_72, %c0_73] : memref<80x256xf32, #tpu.memory_space<vmem>>, vector<8x256xf32>
    tpu.vector_store %arg3[%c56_72, %c0_73], %114 {strides = array<i32>} : memref<80x256xf32, #tpu.memory_space<vmem>>, vector<8x256xf32>,
    %c239_i32_74 = arith.constant 239 : i32
    %116 = tpu.dynamic_rotate %86 by %c239_i32_74 dim 1 : vector<8x256xf32>, i32 -> vector<8x256xf32>
    %cst_75 = arith.constant 0.000000e+00 : f32
    %117 = vector.broadcast %cst_75 : f32 to vector<8x256xf32>
    %118 = arith.select %47, %116, %117 : vector<8x256xi1>, vector<8x256xf32>
    %c64_76 = arith.constant 64 : index
    %c0_77 = arith.constant 0 : index
    %119 = vector.load %arg3[%c64_76, %c0_77] : memref<80x256xf32, #tpu.memory_space<vmem>>, vector<8x256xf32>
    tpu.vector_store %arg3[%c64_76, %c0_77], %118 {strides = array<i32>} : memref<80x256xf32, #tpu.memory_space<vmem>>, vector<8x256xf32>,
    %c0_78 = arith.constant 0 : index
    %c0_79 = arith.constant 0 : index
    %120 = vector.load %arg3[%c0_78, %c0_79] : memref<80x256xf32, #tpu.memory_space<vmem>>, vector<80x256xf32>
    %cst_80 = arith.constant dense<0.000000e+00> : vector<8x256xf32>
    %121 = tpu.matmul %2, %120, %cst_80 {dimension_numbers = #tpu.dot_dimension_numbers<[1], [0], [0], [1], [0, 0, 1, 1], [], []>} : vector<8x80xf32>, vector<80x256xf32>, vector<8x256xf32> -> vector<8x256xf32>
    %122 = arith.addf %121, %0 : vector<8x256xf32>
    %c0_81 = arith.constant 0 : index
    %c0_82 = arith.constant 0 : index
    %123 = vector.load %arg2[%c0_81, %c0_82] : memref<8x256xf32, #tpu.memory_space<vmem>>, vector<8x256xf32>
    tpu.vector_store %arg2[%c0_81, %c0_82], %122 {strides = array<i32>} : memref<8x256xf32, #tpu.memory_space<vmem>>, vector<8x256xf32>,
    return
  }
}

</mosaic_0001>

<llo_original>
// kernel: residual_conv_block.1
$region0: #{residual_conv_block.1}
  #allocation0 [shape = 'u32[]', space=smem, size = 0x4, offset = 0x4, fixed_abs, tag = 'smem constant byte address 0x4 - core index']
  #allocation1 [shape = 'u32[144,128]{1,0:T(1,128)}', space=vmem, size = 0x12000, scoped, tag = 'internal scratch']
  #allocation2 [shape = 'f32[80,256]{1,0:T(8,128)}', space=vmem, size = 0x14000, scoped, tag = 'scratch operand']
  %s0 = inlined_call_operand.vmem [shape: f32[8,256], index: 0, kind: input, shape index: {}]
  %s1 = inlined_call_operand.vmem [shape: f32[16,80], index: 1, kind: input, shape index: {}]
  %s2 = inlined_call_operand.vmem [shape: f32[8,256], index: 2, kind: output, shape index: {}]
  %s3 = sld [smem:[#allocation0]]
  $region18: #{residual_conv_block.1} parent=0
    _
  %s5 = ssub.s32 1, %s3
  %s6 = scalar_select 0, %s5, %s3
  // Predicated region
  $region2: #{residual_conv_block.1} parent=0 // pred_check
    _
  $region3: #{residual_conv_block.1} parent=0 // pred_check_branch
    %8 = sbr.rel (0) target = $region5
  $region4: #{residual_conv_block.1} parent=0 // pred_region
    _
  $region5: #{residual_conv_block.1} parent=0 // pred_fallthru
    _
  // Predicated region
  $region6: #{residual_conv_block.1} parent=0 // pred_check
    _
  $region7: #{residual_conv_block.1} parent=0 // pred_check_branch
    %10 = sbr.rel (0) target = $region9
  $region8: #{residual_conv_block.1} parent=0 // pred_region
    _
  $region9: #{residual_conv_block.1} parent=0 // pred_fallthru
    _
  %v11 = vld [vmem:[%s0] sm:$0xff]
  %v12 = vld [vmem:[%s0 + $0x8] sm:$0xff]
  %v13 = vld [vmem:[%s1] sm:$0xff]
  %v14 = vld [vmem:[%s1 + $0x8] sm:$0xff]
  %v15 = vlaneseq
  %v16 = vand.u32 %v15, 127
  %v17 = vadd.s32 %v16, 128
  %vm18 = vcmp.lt.s32.totalorder %v16, 0
  %v19 = vsub.s32 0, %v16
  %v20 = vsel %vm18, %v19, %v16
  %v21 = vshrl.u32 %v20, 4
  %v22 = vand.u32 %v20, 15
  %v23 = vsub.s32 0, %v22
  %v24 = vsel %vm18, %v23, %v22
  %vm25 = vcmp.lt.s32.totalorder %v17, 0
  %v26 = vsub.s32 0, %v17
  %v27 = vsel %vm25, %v26, %v17
  %v28 = vshrl.u32 %v27, 4
  %v29 = vand.u32 %v27, 15
  %v30 = vsub.s32 0, %v29
  %v31 = vsel %vm25, %v30, %v29
  %vm32 = vcmp.ne.s32.totalorder %v24, 0
  %vm33 = vcmp.ne.s32.totalorder %v31, 0
  %vm34 = vcmp.lt.s32.totalorder %v24, 0
  %vm35 = vcmp.lt.s32.totalorder %v31, 0
  %vm36 = vmand %vm34, %vm32
  %vm37 = vmand %vm35, %vm33
  %v38 = vadd.s32 %v24, 16
  %v39 = vadd.s32 %v31, 16
  %v40 = vsel %vm36, %v38, %v24
  %v41 = vsel %vm37, %v39, %v31
  %vm42 = vcmp.ge.s32.totalorder %v16, 16
  %vm43 = vcmp.ge.s32.totalorder %v17, 16
  %vm44 = vcmp.ge.s32.totalorder %v40, 1
  %vm45 = vcmp.ge.s32.totalorder %v41, 1
  %vm46 = vmand %vm42, %vm44
  %vm47 = vmand %vm43, %vm45
  %vm48 = vcmp.le.s32.totalorder %v40, 14
  %vm49 = vcmp.le.s32.totalorder %v41, 14
  %vm50 = vmand %vm42, %vm48
  %vm51 = vmand %vm43, %vm49
  %vm52 = vcmp.lt.s32.totalorder %v16, 240
  %vm53 = vcmp.lt.s32.totalorder %v17, 240
  %vm54 = vmand %vm52, %vm44
  %vm55 = vmand %vm53, %vm45
  %vm56 = vmand %vm52, %vm48
  %vm57 = vmand %vm53, %vm49
  %58 = vst [vmem:[#allocation2 + $0x90] sm:$0xff] 1.0
  %59 = vst [vmem:[#allocation2 + $0x98] sm:$0xff] 1.0
  %60 = vrot.lane.b32.xlu0 %v11, 17
  %v61 = vpop.permute.xlu0 %60
  %62 = vrot.lane.b32.xlu0 %v12, 17
  %v63 = vpop.permute.xlu0 %62
  %vm64 = vcmp.lt.s32.totalorder %v16, 17
  %v65 = vsel %vm64, %v61, %v63
  %v66 = vsel %vm64, %v63, %v61
  %v67 = vsel %vm46, %v66, 0.0
  %v68 = vsel %vm47, %v65, 0.0
  %69 = vst [vmem:[#allocation2] sm:$0xff] %v67
  %70 = vst [vmem:[#allocation2 + $0x8] sm:$0xff] %v68
  %71 = vrot.lane.b32.xlu0 %v11, 16
  %v72 = vpop.permute.xlu0 %71
  %73 = vrot.lane.b32.xlu0 %v12, 16
  %v74 = vpop.permute.xlu0 %73
  %vm75 = vcmp.lt.s32.totalorder %v16, 16
  %v76 = vsel %vm75, %v72, %v74
  %v77 = vsel %vm75, %v74, %v72
  %v78 = vsel %vm42, %v77, 0.0
  %v79 = vsel %vm43, %v76, 0.0
  %80 = vst [vmem:[#allocation2 + $0x10] sm:$0xff] %v78
  %81 = vst [vmem:[#allocation2 + $0x18] sm:$0xff] %v79
  %82 = vrot.lane.b32.xlu0 %v11, 15
  %v83 = vpop.permute.xlu0 %82
  %84 = vrot.lane.b32.xlu0 %v12, 15
  %v85 = vpop.permute.xlu0 %84
  %vm86 = vcmp.lt.s32.totalorder %v16, 15
  %v87 = vsel %vm86, %v83, %v85
  %v88 = vsel %vm86, %v85, %v83
  %v89 = vsel %vm50, %v88, 0.0
  %v90 = vsel %vm51, %v87, 0.0
  %91 = vst [vmem:[#allocation2 + $0x20] sm:$0xff] %v89
  %92 = vst [vmem:[#allocation2 + $0x28] sm:$0xff] %v90
  %93 = vrot.lane.b32.xlu0 %v11, 1
  %v94 = vpop.permute.xlu0 %93
  %95 = vrot.lane.b32.xlu0 %v12, 1
  %v96 = vpop.permute.xlu0 %95
  %vm97 = vcmp.lt.s32.totalorder %v16, 1
  %v98 = vsel %vm97, %v94, %v96
  %v99 = vsel %vm97, %v96, %v94
  %v100 = vsel %vm44, %v99, 0.0
  %v101 = vsel %vm45, %v98, 0.0
  %102 = vst [vmem:[#allocation2 + $0x30] sm:$0xff] %v100
  %103 = vst [vmem:[#allocation2 + $0x38] sm:$0xff] %v101
  %104 = vst [vmem:[#allocation2 + $0x40] sm:$0xff] %v11
  %105 = vst [vmem:[#allocation2 + $0x48] sm:$0xff] %v12
  %106 = vrot.lane.b32.xlu0 %v11, 127
  %v107 = vpop.permute.xlu0 %106
  %108 = vrot.lane.b32.xlu0 %v12, 127
  %v109 = vpop.permute.xlu0 %108
  %vm110 = vcmp.lt.s32.totalorder %v16, 127
  %v111 = vsel %vm110, %v107, %v109
  %v112 = vsel %vm110, %v109, %v107
  %v113 = vsel %vm48, %v111, 0.0
  %v114 = vsel %vm49, %v112, 0.0
  %115 = vst [vmem:[#allocation2 + $0x50] sm:$0xff] %v113
  %116 = vst [vmem:[#allocation2 + $0x58] sm:$0xff] %v114
  %117 = vrot.lane.b32.xlu0 %v11, 113
  %v118 = vpop.permute.xlu0 %117
  %119 = vrot.lane.b32.xlu0 %v12, 113
  %v120 = vpop.permute.xlu0 %119
  %vm121 = vcmp.lt.s32.totalorder %v16, 113
  %v122 = vsel %vm121, %v118, %v120
  %v123 = vsel %vm121, %v120, %v118
  %v124 = vsel %vm54, %v122, 0.0
  %v125 = vsel %vm55, %v123, 0.0
  %126 = vst [vmem:[#allocation2 + $0x60] sm:$0xff] %v124
  %127 = vst [vmem:[#allocation2 + $0x68] sm:$0xff] %v125
  %128 = vrot.lane.b32.xlu0 %v11, 112
  %v129 = vpop.permute.xlu0 %128
  %130 = vrot.lane.b32.xlu0 %v12, 112
  %v131 = vpop.permute.xlu0 %130
  %vm132 = vcmp.lt.s32.totalorder %v16, 112
  %v133 = vsel %vm132, %v129, %v131
  %v134 = vsel %vm132, %v131, %v129
  %v135 = vsel %vm52, %v133, 0.0
  %v136 = vsel %vm53, %v134, 0.0
  %137 = vst [vmem:[#allocation2 + $0x70] sm:$0xff] %v135
  %138 = vst [vmem:[#allocation2 + $0x78] sm:$0xff] %v136
  %139 = vrot.lane.b32.xlu0 %v11, 111
  %v140 = vpop.permute.xlu0 %139
  %141 = vrot.lane.b32.xlu0 %v12, 111
  %v142 = vpop.permute.xlu0 %141
  %vm143 = vcmp.lt.s32.totalorder %v16, 111
  %v144 = vsel %vm143, %v140, %v142
  %v145 = vsel %vm143, %v142, %v140
  %v146 = vsel %vm56, %v144, 0.0
  %v147 = vsel %vm57, %v145, 0.0
  %148 = vst [vmem:[#allocation2 + $0x80] sm:$0xff] %v146
  %149 = vst [vmem:[#allocation2 + $0x88] sm:$0xff] %v147
  %v150 = vld [vmem:[#allocation2] sm:$0xff]
  %v151 = vld [vmem:[#allocation2 + $0x8] sm:$0xff]
  %v152 = vld [vmem:[#allocation2 + $0x10] sm:$0xff]
  %v153 = vld [vmem:[#allocation2 + $0x18] sm:$0xff]
  %v154 = vld [vmem:[#allocation2 + $0x20] sm:$0xff]
  %v155 = vld [vmem:[#allocation2 + $0x28] sm:$0xff]
  %v156 = vld [vmem:[#allocation2 + $0x30] sm:$0xff]
  %v157 = vld [vmem:[#allocation2 + $0x38] sm:$0xff]
  %v158 = vld [vmem:[#allocation2 + $0x40] sm:$0xff]
  %v159 = vld [vmem:[#allocation2 + $0x48] sm:$0xff]
  %v160 = vld [vmem:[#allocation2 + $0x50] sm:$0xff]
  %v161 = vld [vmem:[#allocation2 + $0x58] sm:$0xff]
  %v162 = vld [vmem:[#allocation2 + $0x60] sm:$0xff]
  %v163 = vld [vmem:[#allocation2 + $0x68] sm:$0xff]
  %v164 = vld [vmem:[#allocation2 + $0x70] sm:$0xff]
  %v165 = vld [vmem:[#allocation2 + $0x78] sm:$0xff]
  %v166 = vld [vmem:[#allocation2 + $0x80] sm:$0xff]
  %v167 = vld [vmem:[#allocation2 + $0x88] sm:$0xff]
  %v168 = vld [vmem:[#allocation2 + $0x90] sm:$0xff]
  %v169 = vld [vmem:[#allocation2 + $0x98] sm:$0xff]
  %vm170 = vcmask 654336
  %v172 = vsel %vm170, %v13, 0
  %174 = vmatprep.subr.mxu0 %v151
  %175 = vmatpush1.msra.mxu0 %v150
  %176 = vmatprep.subr.mxu0 %v153
  %177 = vmatpush1.msra.mxu0 %v152
  %178 = vmatprep.subr.mxu0 %v155
  %179 = vmatpush1.msra.mxu0 %v154
  %180 = vmatprep.subr.mxu0 %v157
  %181 = vmatpush1.msra.mxu0 %v156
  %182 = vmatprep.subr.mxu0 %v159
  %183 = vmatpush1.msra.mxu0 %v158
  %184 = vmatprep.subr.mxu0 %v161
  %185 = vmatpush1.msra.mxu0 %v160
  %186 = vmatprep.subr.mxu0 %v163
  %187 = vmatpush1.msra.mxu0 %v162
  %188 = vmatprep.subr.mxu0 %v165
  %189 = vmatpush1.msra.mxu0 %v164
  %190 = vmatprep.subr.mxu0 %v167
  %191 = vmatpush1.msra.mxu0 %v166
  %192 = vmatprep.subr.mxu0 %v169
  %193 = vmatpush1.msra.mxu0 %v168
  %194 = vmatprep.subr.mxu0 0.0
  %195 = vmatpush1.msra.mxu0 0.0
  %196 = vmatprep.subr.mxu0 0.0
  %197 = vmatpush1.msra.mxu0 0.0
  %198 = vmatprep.subr.mxu0 0.0
  %199 = vmatpush1.msra.mxu0 0.0
  %200 = vmatprep.subr.mxu0 0.0
  %201 = vmatpush1.msra.mxu0 0.0
  %202 = vmatprep.subr.mxu0 0.0
  %203 = vmatpush1.msra.mxu0 0.0
  %204 = vmatprep.subr.mxu0 0.0
  %205 = vmatpush1.msra.mxu0 0.0
  %206 = vmatprep.subr.mxu0 0.0
  %207 = vmatpush1.msra.mxu0 0.0
  %208 = vmatprep.subr.mxu0 0.0
  %209 = vmatpush1.msra.mxu0 0.0
  %210 = vmatprep.subr.mxu0 0.0
  %211 = vmatpush1.msra.mxu0 0.0
  %212 = vmatprep.subr.mxu0 0.0
  %213 = vmatpush1.msra.mxu0 0.0
  %214 = vmatprep.subr.mxu0 0.0
  %215 = vmatpush1.msra.mxu0 0.0
  %216 = vmatprep.subr.mxu0 0.0
  %217 = vmatpush1.msra.mxu0 0.0
  %218 = vmatprep.subr.mxu0 0.0
  %219 = vmatpush1.msra.mxu0 0.0
  %220 = vmatprep.subr.mxu0 0.0
  %221 = vmatpush1.msra.mxu0 0.0
  %222 = vmatprep.subr.mxu0 0.0
  %223 = vmatpush1.msra.mxu0 0.0
  %224 = vmatprep.subr.mxu0 0.0
  %225 = vmatpush1.msra.mxu0 0.0
  %226 = vmatprep.subr.mxu0 0.0
  %227 = vmatpush1.msra.mxu0 0.0
  %228 = vmatprep.subr.mxu0 0.0
  %229 = vmatpush1.msra.mxu0 0.0
  %230 = vmatprep.subr.mxu0 0.0
  %231 = vmatpush1.msra.mxu0 0.0
  %232 = vmatprep.subr.mxu0 0.0
  %233 = vmatpush1.msra.mxu0 0.0
  %234 = vmatprep.subr.mxu0 0.0
  %235 = vmatpush1.msra.mxu0 0.0
  %236 = vmatprep.subr.mxu0 0.0
  %237 = vmatpush1.msra.mxu0 0.0
  %238 = vmatprep.mubr.f32.mxu0 0.0
  %239 = vmatmul.mubr.f32.gmra.mrb[0].mxu0 %v172
  %v240 = vpop.f32.mrb[0].mxu0
  %v241 = vadd.f32 0.0, %v240
  %v242 = vpop.f32.mrb[0].mxu0
  %v243 = vadd.f32 0.0, %v242
  %244 = vdwg.mxu0
  %v245 = vmax.f32 %v241, 0.0
  %v246 = vmax.f32 %v243, 0.0
  %247 = vrot.lane.b32.xlu0 %v245, 17
  %v248 = vpop.permute.xlu0 %247
  %249 = vrot.lane.b32.xlu0 %v246, 17
  %v250 = vpop.permute.xlu0 %249
  %v251 = vsel %vm64, %v248, %v250
  %v252 = vsel %vm64, %v250, %v248
  %v253 = vsel %vm46, %v252, 0.0
  %v254 = vsel %vm47, %v251, 0.0
  %255 = vst [vmem:[#allocation2] sm:$0xff] %v253
  %256 = vst [vmem:[#allocation2 + $0x8] sm:$0xff] %v254
  %257 = vrot.lane.b32.xlu0 %v245, 16
  %v258 = vpop.permute.xlu0 %257
  %259 = vrot.lane.b32.xlu0 %v246, 16
  %v260 = vpop.permute.xlu0 %259
  %v261 = vsel %vm75, %v258, %v260
  %v262 = vsel %vm75, %v260, %v258
  %v263 = vsel %vm42, %v262, 0.0
  %v264 = vsel %vm43, %v261, 0.0
  %265 = vst [vmem:[#allocation2 + $0x10] sm:$0xff] %v263
  %266 = vst [vmem:[#allocation2 + $0x18] sm:$0xff] %v264
  %267 = vrot.lane.b32.xlu0 %v245, 15
  %v268 = vpop.permute.xlu0 %267
  %269 = vrot.lane.b32.xlu0 %v246, 15
  %v270 = vpop.permute.xlu0 %269
  %v271 = vsel %vm86, %v268, %v270
  %v272 = vsel %vm86, %v270, %v268
  %v273 = vsel %vm50, %v272, 0.0
  %v274 = vsel %vm51, %v271, 0.0
  %275 = vst [vmem:[#allocation2 + $0x20] sm:$0xff] %v273
  %276 = vst [vmem:[#allocation2 + $0x28] sm:$0xff] %v274
  %277 = vrot.lane.b32.xlu0 %v245, 1
  %v278 = vpop.permute.xlu0 %277
  %279 = vrot.lane.b32.xlu0 %v246, 1
  %v280 = vpop.permute.xlu0 %279
  %v281 = vsel %vm97, %v278, %v280
  %v282 = vsel %vm97, %v280, %v278
  %v283 = vsel %vm44, %v282, 0.0
  %v284 = vsel %vm45, %v281, 0.0
  %285 = vst [vmem:[#allocation2 + $0x30] sm:$0xff] %v283
  %286 = vst [vmem:[#allocation2 + $0x38] sm:$0xff] %v284
  %287 = vst [vmem:[#allocation2 + $0x40] sm:$0xff] %v245
  %288 = vst [vmem:[#allocation2 + $0x48] sm:$0xff] %v246
  %289 = vrot.lane.b32.xlu0 %v245, 127
  %v290 = vpop.permute.xlu0 %289
  %291 = vrot.lane.b32.xlu0 %v246, 127
  %v292 = vpop.permute.xlu0 %291
  %v293 = vsel %vm110, %v290, %v292
  %v294 = vsel %vm110, %v292, %v290
  %v295 = vsel %vm48, %v293, 0.0
  %v296 = vsel %vm49, %v294, 0.0
  %297 = vst [vmem:[#allocation2 + $0x50] sm:$0xff] %v295
  %298 = vst [vmem:[#allocation2 + $0x58] sm:$0xff] %v296
  %299 = vrot.lane.b32.xlu0 %v245, 113
  %v300 = vpop.permute.xlu0 %299
  %301 = vrot.lane.b32.xlu0 %v246, 113
  %v302 = vpop.permute.xlu0 %301
  %v303 = vsel %vm121, %v300, %v302
  %v304 = vsel %vm121, %v302, %v300
  %v305 = vsel %vm54, %v303, 0.0
  %v306 = vsel %vm55, %v304, 0.0
  %307 = vst [vmem:[#allocation2 + $0x60] sm:$0xff] %v305
  %308 = vst [vmem:[#allocation2 + $0x68] sm:$0xff] %v306
  %309 = vrot.lane.b32.xlu0 %v245, 112
  %v310 = vpop.permute.xlu0 %309
  %311 = vrot.lane.b32.xlu0 %v246, 112
  %v312 = vpop.permute.xlu0 %311
  %v313 = vsel %vm132, %v310, %v312
  %v314 = vsel %vm132, %v312, %v310
  %v315 = vsel %vm52, %v313, 0.0
  %v316 = vsel %vm53, %v314, 0.0
  %317 = vst [vmem:[#allocation2 + $0x70] sm:$0xff] %v315
  %318 = vst [vmem:[#allocation2 + $0x78] sm:$0xff] %v316
  %319 = vrot.lane.b32.xlu0 %v245, 111
  %v320 = vpop.permute.xlu0 %319
  %321 = vrot.lane.b32.xlu0 %v246, 111
  %v322 = vpop.permute.xlu0 %321
  %v323 = vsel %vm143, %v320, %v322
  %v324 = vsel %vm143, %v322, %v320
  %v325 = vsel %vm56, %v323, 0.0
  %v326 = vsel %vm57, %v324, 0.0
  %327 = vst [vmem:[#allocation2 + $0x80] sm:$0xff] %v325
  %328 = vst [vmem:[#allocation2 + $0x88] sm:$0xff] %v326
  %v329 = vld [vmem:[#allocation2] sm:$0xff]
  %v330 = vld [vmem:[#allocation2 + $0x8] sm:$0xff]
  %v331 = vld [vmem:[#allocation2 + $0x10] sm:$0xff]
  %v332 = vld [vmem:[#allocation2 + $0x18] sm:$0xff]
  %v333 = vld [vmem:[#allocation2 + $0x20] sm:$0xff]
  %v334 = vld [vmem:[#allocation2 + $0x28] sm:$0xff]
  %v335 = vld [vmem:[#allocation2 + $0x30] sm:$0xff]
  %v336 = vld [vmem:[#allocation2 + $0x38] sm:$0xff]
  %v337 = vld [vmem:[#allocation2 + $0x40] sm:$0xff]
  %v338 = vld [vmem:[#allocation2 + $0x48] sm:$0xff]
  %v339 = vld [vmem:[#allocation2 + $0x50] sm:$0xff]
  %v340 = vld [vmem:[#allocation2 + $0x58] sm:$0xff]
  %v341 = vld [vmem:[#allocation2 + $0x60] sm:$0xff]
  %v342 = vld [vmem:[#allocation2 + $0x68] sm:$0xff]
  %v343 = vld [vmem:[#allocation2 + $0x70] sm:$0xff]
  %v344 = vld [vmem:[#allocation2 + $0x78] sm:$0xff]
  %v345 = vld [vmem:[#allocation2 + $0x80] sm:$0xff]
  %v346 = vld [vmem:[#allocation2 + $0x88] sm:$0xff]
  %v347 = vld [vmem:[#allocation2 + $0x90] sm:$0xff]
  %v348 = vld [vmem:[#allocation2 + $0x98] sm:$0xff]
  %v350 = vsel %vm170, %v14, 0
  %352 = vmatprep.subr.mxu0 %v330
  %353 = vmatpush1.msra.mxu0 %v329
  %354 = vmatprep.subr.mxu0 %v332
  %355 = vmatpush1.msra.mxu0 %v331
  %356 = vmatprep.subr.mxu0 %v334
  %357 = vmatpush1.msra.mxu0 %v333
  %358 = vmatprep.subr.mxu0 %v336
  %359 = vmatpush1.msra.mxu0 %v335
  %360 = vmatprep.subr.mxu0 %v338
  %361 = vmatpush1.msra.mxu0 %v337
  %362 = vmatprep.subr.mxu0 %v340
  %363 = vmatpush1.msra.mxu0 %v339
  %364 = vmatprep.subr.mxu0 %v342
  %365 = vmatpush1.msra.mxu0 %v341
  %366 = vmatprep.subr.mxu0 %v344
  %367 = vmatpush1.msra.mxu0 %v343
  %368 = vmatprep.subr.mxu0 %v346
  %369 = vmatpush1.msra.mxu0 %v345
  %370 = vmatprep.subr.mxu0 %v348
  %371 = vmatpush1.msra.mxu0 %v347
  %372 = vmatprep.subr.mxu0 0.0
  %373 = vmatpush1.msra.mxu0 0.0
  %374 = vmatprep.subr.mxu0 0.0
  %375 = vmatpush1.msra.mxu0 0.0
  %376 = vmatprep.subr.mxu0 0.0
  %377 = vmatpush1.msra.mxu0 0.0
  %378 = vmatprep.subr.mxu0 0.0
  %379 = vmatpush1.msra.mxu0 0.0
  %380 = vmatprep.subr.mxu0 0.0
  %381 = vmatpush1.msra.mxu0 0.0
  %382 = vmatprep.subr.mxu0 0.0
  %383 = vmatpush1.msra.mxu0 0.0
  %384 = vmatprep.subr.mxu0 0.0
  %385 = vmatpush1.msra.mxu0 0.0
  %386 = vmatprep.subr.mxu0 0.0
  %387 = vmatpush1.msra.mxu0 0.0
  %388 = vmatprep.subr.mxu0 0.0
  %389 = vmatpush1.msra.mxu0 0.0
  %390 = vmatprep.subr.mxu0 0.0
  %391 = vmatpush1.msra.mxu0 0.0
  %392 = vmatprep.subr.mxu0 0.0
  %393 = vmatpush1.msra.mxu0 0.0
  %394 = vmatprep.subr.mxu0 0.0
  %395 = vmatpush1.msra.mxu0 0.0
  %396 = vmatprep.subr.mxu0 0.0
  %397 = vmatpush1.msra.mxu0 0.0
  %398 = vmatprep.subr.mxu0 0.0
  %399 = vmatpush1.msra.mxu0 0.0
  %400 = vmatprep.subr.mxu0 0.0
  %401 = vmatpush1.msra.mxu0 0.0
  %402 = vmatprep.subr.mxu0 0.0
  %403 = vmatpush1.msra.mxu0 0.0
  %404 = vmatprep.subr.mxu0 0.0
  %405 = vmatpush1.msra.mxu0 0.0
  %406 = vmatprep.subr.mxu0 0.0
  %407 = vmatpush1.msra.mxu0 0.0
  %408 = vmatprep.subr.mxu0 0.0
  %409 = vmatpush1.msra.mxu0 0.0
  %410 = vmatprep.subr.mxu0 0.0
  %411 = vmatpush1.msra.mxu0 0.0
  %412 = vmatprep.subr.mxu0 0.0
  %413 = vmatpush1.msra.mxu0 0.0
  %414 = vmatprep.subr.mxu0 0.0
  %415 = vmatpush1.msra.mxu0 0.0
  %416 = vmatprep.mubr.f32.mxu0 0.0
  %417 = vmatmul.mubr.f32.gmra.mrb[0].mxu0 %v350
  %v418 = vpop.f32.mrb[0].mxu0
  %v419 = vadd.f32 %v11, %v418
  %v420 = vpop.f32.mrb[0].mxu0
  %v421 = vadd.f32 %v12, %v420
  %422 = vdwg.mxu0
  %423 = vst [vmem:[%s2] sm:$0xff] %v419
  %424 = vst [vmem:[%s2 + $0x8] sm:$0xff] %v421
  // Predicated region
  $region10: #{residual_conv_block.1} parent=0 // pred_check
    _
  $region11: #{residual_conv_block.1} parent=0 // pred_check_branch
    %426 = sbr.rel (0) target = $region13
  $region12: #{residual_conv_block.1} parent=0 // pred_region
    _
  $region13: #{residual_conv_block.1} parent=0 // pred_fallthru
    _
  // Predicated region
  $region14: #{residual_conv_block.1} parent=0 // pred_check
    _
  $region15: #{residual_conv_block.1} parent=0 // pred_check_branch
    %428 = sbr.rel (0) target = $region17
  $region16: #{residual_conv_block.1} parent=0 // pred_region
    _
  $region17: #{residual_conv_block.1} parent=0 // pred_fallthru
    _

</llo_original>
